<compile_context>
chip_gen: v7x
topology: tpu7x:2x2x1
jax: 0.10.0
libtpu: 0.0.40
codegen_flags: <defaults>
</compile_context>

<pallas_src>
import math
import functools

import jax
import jax.numpy as jnp
from jax.experimental import pallas as pl
from jax.experimental.pallas import tpu as pltpu


def _round_up(v, m):
    return (v + m - 1) // m * m


def _round_down(v, m):
    return (v // m) * m


def _vmem_capacity_bytes():
    """Physical VMEM per TensorCore; conservative 64 MiB (v7x) fallback."""
    try:
        info = pltpu.get_tpu_info()
        cap = getattr(info, "vmem_capacity_bytes", None)
        if cap:
            return int(cap)
    except Exception:
        pass
    return 64 * 2 ** 20


def _gcn_kernel(xw_ref, adj_ref, addin_ref, out_ref, *scratch,
                one_minus_alpha, tk, xw_resident, use_acc):
    """Grid point (i, k):  acc[i] += adj[i, k] @ xw[k];  epilogue at k == last."""
    acc_ref = scratch[0] if use_acc else out_ref
    k = pl.program_id(1)

    @pl.when(k == 0)
    def _():
        acc_ref[...] = jnp.zeros_like(acc_ref)

    if xw_resident:
        # Whole xw is resident in VMEM; slice the current contraction window.
        xw = xw_ref[pl.ds(pl.multiple_of(k * tk, 128), tk), :]
    else:
        xw = xw_ref[...]

    # bf16 MXU inputs, f32 accumulation.
    acc_ref[...] += jnp.dot(adj_ref[...], xw, preferred_element_type=jnp.float32)

    @pl.when(k == pl.num_programs(1) - 1)
    def _():
        out = one_minus_alpha * acc_ref[...] + addin_ref[...]
        out_ref[...] = out.astype(out_ref.dtype)


def graph_convolution(x, adj, h0, weight, *, lamda, alpha, l, residual=False,
                      compute_dtype=jnp.bfloat16, tm=512, tk=512, xw_resident=None):
    """Fused GCNII GraphConvolution forward (variant=False)."""
    n, f = x.shape
    assert adj.shape == (n, n)
    assert h0.shape == (n, f)
    assert weight.shape == (f, f), "non-variant layer needs in_features == out_features"

    theta = math.log(lamda / l + 1.0)
    out_dtype = x.dtype
    use_acc = (jnp.dtype(out_dtype) != jnp.dtype(jnp.float32))

    x32 = x.astype(jnp.float32)
    h032 = h0.astype(jnp.float32)
    w32 = weight.astype(jnp.float32)

    # Fold theta into the weight and re-associate so the (N,F)x(F,F) matmuls move to
    # the wrapper (f32, handled by XLA):
    #   out = (1-alpha) * (adj @ (x @ W')) + alpha * (h0 @ W')  [+ x]
    w_folded = theta * w32 + (1.0 - theta) * jnp.eye(f, dtype=jnp.float32)
    xw = x32 @ w_folded
    addin = alpha * (h032 @ w_folded)
    if residual:
        addin = addin + x32

    # ---- Tile selection: 128-multiples, pad UP (never gcd-shrink) ----
    f_p = _round_up(f, 128)
    n128 = _round_up(n, 128)

    tm = max(128, min(_round_up(tm, 128), n128))
    if n128 >= 256:
        # Keep >= 2 node tiles so the 'parallel' axis can shard across TensorCores (v7x).
        tm = min(tm, max(128, _round_down(n128 // 2, 128)))
    tk = max(128, min(_round_up(tk, 128), n128))

    n_pm = _round_up(n, tm)   # padded rows (node-tile axis)
    n_pk = _round_up(n, tk)   # padded cols (contraction axis)
    grid = (n_pm // tm, n_pk // tk)

    # ---- Per-generation VMEM budget and xw residency decision ----
    cbytes = jnp.dtype(compute_dtype).itemsize
    obytes = jnp.dtype(out_dtype).itemsize
    vmem_cap = _vmem_capacity_bytes()
    budget_cap = int(0.75 * vmem_cap)   # headroom for Mosaic scratch / semaphores

    common = (2 * tm * tk * cbytes          # adj (double-buffered O(N^2) stream)
              + 2 * tm * f_p * 4            # addin (f32)
              + 2 * tm * f_p * obytes       # out
              + (tm * f_p * 4 if use_acc else 0))
    fp_resident = common + 2 * n_pk * f_p * cbytes
    fp_stream = common + 2 * tk * f_p * cbytes
    if xw_resident is None:
        xw_resident = fp_resident <= budget_cap
    footprint = fp_resident if xw_resident else fp_stream

    vmem_limit = int(footprint * 1.3) + (4 << 20)
    vmem_limit = max(vmem_limit, 32 << 20)
    vmem_limit = min(vmem_limit, budget_cap)
    vmem_limit = max(vmem_limit, 16 << 20)

    # ---- Pad operands (zero padding is exact; padded rows/cols are sliced off) ----
    def pad2(a, rows, cols, dtype):
        a = a.astype(dtype)
        return jnp.pad(a, ((0, rows - a.shape[0]), (0, cols - a.shape[1])))

    xw_c = pad2(xw, n_pk, f_p, compute_dtype)      # (Npk, Fp)  bf16
    adj_c = pad2(adj, n_pm, n_pk, compute_dtype)   # (Npm, Npk) bf16, streamed
    add_c = pad2(addin, n_pm, f_p, jnp.float32)    # (Npm, Fp)  f32

    if xw_resident:
        xw_spec = pl.BlockSpec((n_pk, f_p), lambda i, k: (0, 0))   # DMA'd once, resident
    else:
        xw_spec = pl.BlockSpec((tk, f_p), lambda i, k: (k, 0))     # streamed over k

    in_specs = [
        xw_spec,
        pl.BlockSpec((tm, tk), lambda i, k: (i, k)),     # adj tiles (pipelined)
        pl.BlockSpec((tm, f_p), lambda i, k: (i, 0)),    # addin (node-tile only)
    ]
    out_specs = pl.BlockSpec((tm, f_p), lambda i, k: (i, 0))
    scratch_shapes = (pltpu.VMEM((tm, f_p), jnp.float32),) if use_acc else ()

    xw_hbm_reads = 1 if xw_resident else grid[0]
    cost = pl.CostEstimate(
        flops=2 * n_pm * n_pk * f_p,
        transcendentals=0,
        bytes_accessed=int(n_pm * n_pk * cbytes
                           + xw_hbm_reads * n_pk * f_p * cbytes
                           + n_pm * f_p * 4
                           + n_pm * f_p * obytes),
    )

    kernel = functools.partial(
        _gcn_kernel,
        one_minus_alpha=float(1.0 - alpha),
        tk=int(tk),
        xw_resident=bool(xw_resident),
        use_acc=bool(use_acc),
    )

    out_padded = pl.pallas_call(
        kernel,
        out_shape=jax.ShapeDtypeStruct((n_pm, f_p), out_dtype),
        grid_spec=pltpu.PrefetchScalarGridSpec(
            num_scalar_prefetch=0,
            grid=grid,
            in_specs=in_specs,
            out_specs=out_specs,
            scratch_shapes=scratch_shapes,
        ),
        compiler_params=pltpu.CompilerParams(
            dimension_semantics=("parallel", "arbitrary"),
            vmem_limit_bytes=int(vmem_limit),
        ),
        cost_estimate=cost,
    )(xw_c, adj_c, add_c)

    return out_padded[:n, :f]


def _reference(x, adj, h0, weight, *, lamda, alpha, l, residual=False):
    theta = math.log(lamda / l + 1.0)
    hi = adj @ x
    support = (1.0 - alpha) * hi + alpha * h0
    out = theta * (support @ weight) + (1.0 - theta) * support
    if residual:
        out = out + x
    return out


def _make_inputs(key, n, f):
    k_x, k_adj, k_h0, k_w = jax.random.split(key, 4)
    x = jax.random.normal(k_x, (n, f), dtype=jnp.float32)
    h0 = jax.random.normal(k_h0, (n, f), dtype=jnp.float32)
    # Symmetric row-normalized random adjacency (dense stand-in for spmm).
    a_raw = (jax.random.uniform(k_adj, (n, n)) < 0.1).astype(jnp.float32)
    a_sym = a_raw + a_raw.T + jnp.eye(n, dtype=jnp.float32)
    deg = jnp.sum(a_sym, axis=1, keepdims=True)
    adj = a_sym / deg
    # reset_parameters(): uniform(-stdv, stdv), stdv = 1 / sqrt(out_features)
    stdv = 1.0 / math.sqrt(f)
    weight = jax.random.uniform(k_w, (f, f), minval=-stdv, maxval=stdv, dtype=jnp.float32)
    return x, adj, h0, weight


if __name__ == "__main__":
    key = jax.random.PRNGKey(0)
    lamda, alpha, layer_l = 0.5, 0.1, 1

    # Case 0/1: small single-tile graph (grid (1,1)), both residual settings.
    # Case 2:   N=200, F=48 with 128x128 tiles -> padded (256,256), grid (2,2):
    #           exercises multi-step K accumulation, init/epilogue, asymmetric padding.
    # Case 3:   same shape with the non-resident (streamed) xw path forced.
    cases = [
        dict(n=64, f=32, residual=False, kw={}),
        dict(n=64, f=32, residual=True, kw={}),
        dict(n=200, f=48, residual=True, kw=dict(tm=128, tk=128)),
        dict(n=200, f=48, residual=False, kw=dict(tm=128, tk=128, xw_resident=False)),
    ]
    for idx, c in enumerate(cases):
        x, adj, h0, weight = _make_inputs(jax.random.fold_in(key, idx), c["n"], c["f"])
        out = graph_convolution(x, adj, h0, weight,
                                lamda=lamda, alpha=alpha, l=layer_l,
                                residual=c["residual"], **c["kw"])
        out = jax.block_until_ready(out)
        ref = _reference(x, adj, h0, weight,
                         lamda=lamda, alpha=alpha, l=layer_l, residual=c["residual"])
        assert out.shape == (c["n"], c["f"])
        err = float(jnp.max(jnp.abs(out - ref)))
        # adj @ xw runs on the MXU in bf16 (f32 accumulation) -> bf16-level tolerance.
        assert jnp.allclose(out, ref, atol=2e-2, rtol=2e-2), \
            f"case {idx} mismatch vs reference (max abs err {err:.4e})"

    print("KERNEL_OK")
</pallas_src>

<mosaic_0001>
module attributes {stable_mosaic.version = 11 : i64} {
  func.func @_gcn_kernel(%arg0: i32, %arg1: i32, %arg2: memref<128x128xbf16, #tpu.memory_space<vmem>>, %arg3: memref<128x128xbf16, #tpu.memory_space<vmem>>, %arg4: memref<128x128xf32, #tpu.memory_space<vmem>>, %arg5: memref<128x128xf32, #tpu.memory_space<vmem>>) attributes {dimension_semantics = [#tpu.dimension_semantics<parallel>, #tpu.dimension_semantics<arbitrary>], iteration_bounds = array<i64: 1, 1>, scalar_prefetch = 0 : i64, scratch_operands = 0 : i64, tpu.core_type = #tpu.core_type<tc>, window_params = [{pipeline_mode = #tpu.pipeline_mode<synchronous>, transform_indices = @transform_0, window_bounds = array<i64: 128, 128>}, {transform_indices = @transform_1, window_bounds = array<i64: 128, 128>}, {transform_indices = @transform_2, window_bounds = array<i64: 128, 128>}, {transform_indices = @transform_3, window_bounds = array<i64: 128, 128>}]} {
    %c0_i32 = arith.constant 0 : i32
    %0 = arith.cmpi eq, %arg1, %c0_i32 : i32
    %1 = arith.extui %0 : i1 to i32
    %c0_i32_0 = arith.constant 0 : i32
    %2 = arith.cmpi ne, %1, %c0_i32_0 : i32
    scf.if %2 {
      %cst_9 = arith.constant 0.000000e+00 : f32
      %15 = vector.broadcast %cst_9 : f32 to vector<128x128xf32>
      %c0_10 = arith.constant 0 : index
      %c0_11 = arith.constant 0 : index
      %16 = vector.load %arg5[%c0_10, %c0_11] : memref<128x128xf32, #tpu.memory_space<vmem>>, vector<128x128xf32>
      tpu.vector_store %arg5[%c0_10, %c0_11], %15 {strides = array<i32>} : memref<128x128xf32, #tpu.memory_space<vmem>>, vector<128x128xf32>,
    } else {
    }
    %c128_i32 = arith.constant 128 : i32
    %3 = arith.muli %arg1, %c128_i32 : i32
    %4 = tpu.assume_multiple %3, 128 : i32
    %5 = arith.index_cast %4 : i32 to index
    %c0 = arith.constant 0 : index
    %6 = vector.load %arg2[%5, %c0] : memref<128x128xbf16, #tpu.memory_space<vmem>>, vector<128x128xbf16>
    %c0_1 = arith.constant 0 : index
    %c0_2 = arith.constant 0 : index
    %7 = vector.load %arg5[%c0_1, %c0_2] : memref<128x128xf32, #tpu.memory_space<vmem>>, vector<128x128xf32>
    %c0_3 = arith.constant 0 : index
    %c0_4 = arith.constant 0 : index
    %8 = vector.load %arg3[%c0_3, %c0_4] : memref<128x128xbf16, #tpu.memory_space<vmem>>, vector<128x128xbf16>
    %cst = arith.constant dense<0.000000e+00> : vector<128x128xf32>
    %9 = tpu.matmul %8, %6, %cst {dimension_numbers = #tpu.dot_dimension_numbers<[1], [0], [0], [1], [0, 0, 1, 1], [], []>} : vector<128x128xbf16>, vector<128x128xbf16>, vector<128x128xf32> -> vector<128x128xf32>
    %10 = arith.addf %7, %9 : vector<128x128xf32>
    %c0_5 = arith.constant 0 : index
    %c0_6 = arith.constant 0 : index
    %11 = vector.load %arg5[%c0_5, %c0_6] : memref<128x128xf32, #tpu.memory_space<vmem>>, vector<128x128xf32>
    tpu.vector_store %arg5[%c0_5, %c0_6], %10 {strides = array<i32>} : memref<128x128xf32, #tpu.memory_space<vmem>>, vector<128x128xf32>,
    %c0_i32_7 = arith.constant 0 : i32
    %12 = arith.cmpi eq, %arg1, %c0_i32_7 : i32
    %13 = arith.extui %12 : i1 to i32
    %c0_i32_8 = arith.constant 0 : i32
    %14 = arith.cmpi ne, %13, %c0_i32_8 : i32
    scf.if %14 {
      %c0_9 = arith.constant 0 : index
      %c0_10 = arith.constant 0 : index
      %15 = vector.load %arg5[%c0_9, %c0_10] : memref<128x128xf32, #tpu.memory_space<vmem>>, vector<128x128xf32>
      %cst_11 = arith.constant 0.899999976 : f32
      %16 = vector.broadcast %cst_11 : f32 to vector<128x128xf32>
      %17 = arith.mulf %16, %15 : vector<128x128xf32>
      %c0_12 = arith.constant 0 : index
      %c0_13 = arith.constant 0 : index
      %18 = vector.load %arg4[%c0_12, %c0_13] : memref<128x128xf32, #tpu.memory_space<vmem>>, vector<128x128xf32>
      %19 = arith.addf %17, %18 : vector<128x128xf32>
      %c0_14 = arith.constant 0 : index
      %c0_15 = arith.constant 0 : index
      %20 = vector.load %arg5[%c0_14, %c0_15] : memref<128x128xf32, #tpu.memory_space<vmem>>, vector<128x128xf32>
      tpu.vector_store %arg5[%c0_14, %c0_15], %19 {strides = array<i32>} : memref<128x128xf32, #tpu.memory_space<vmem>>, vector<128x128xf32>,
    } else {
    }
    return
  }
  func.func @transform_0(%arg0: i32, %arg1: i32) -> (i32, i32) {
    %c0_i32 = arith.constant 0 : i32
    %c0_i32_0 = arith.constant 0 : i32
    %c0_i32_1 = arith.constant 0 : i32
    return %c0_i32, %c0_i32_0 : i32, i32
  }
  func.func @transform_1(%arg0: i32, %arg1: i32) -> (i32, i32) {
    %c0_i32 = arith.constant 0 : i32
    return %arg0, %arg1 : i32, i32
  }
  func.func @transform_2(%arg0: i32, %arg1: i32) -> (i32, i32) {
    %c0_i32 = arith.constant 0 : i32
    %c0_i32_0 = arith.constant 0 : i32
    return %arg0, %c0_i32 : i32, i32
  }
  func.func @transform_3(%arg0: i32, %arg1: i32) -> (i32, i32) {
    %c0_i32 = arith.constant 0 : i32
    %c0_i32_0 = arith.constant 0 : i32
    return %arg0, %c0_i32 : i32, i32
  }
}

</mosaic_0001>

<llo_original>
// kernel: tpu_custom_call.1
$region0: #{tpu_custom_call.1}
  #allocation0 [shape = 'u32[]', space=smem, size = 0x4, offset = 0x4, fixed_abs, tag = 'smem constant byte address 0x4 - core index']
  #allocation1 [shape = 'u32[144,128]{1,0:T(1,128)}', space=vmem, size = 0x12000, scoped, tag = 'internal scratch']
  %s0 = inlined_call_operand.hbm [shape: bf16[128,128], index: 0, kind: input, shape index: {}]
  %s1 = inlined_call_operand.hbm [shape: bf16[128,128], index: 1, kind: input, shape index: {}]
  %s2 = inlined_call_operand.hbm [shape: f32[128,128], index: 2, kind: input, shape index: {}]
  %s3 = inlined_call_operand.hbm [shape: f32[128,128], index: 3, kind: output, shape index: {}]
  %s4 = sld [smem:[#allocation0]]
  $region42: #{tpu_custom_call.1} parent=0
    _
  %s6 = ssub.s32 1, %s4
  %s7 = scalar_select 0, %s6, %s4
  $region1: #{tpu_custom_call.1} parent=0
    #allocation2 [shape = 'u8[32768]{0}', space=vmem, size = 0x8000, scoped, tag = 'input window, operand 0, single buffered']
    #allocation3 [shape = 's32[1]{0}', space=sflag, size = 0x4, scoped, tag = 'scoped memory for tpu_custom_call.1']
    #allocation4 [shape = 's32[1]{0}', space=sflag, size = 0x4, scoped, tag = 'scoped memory for tpu_custom_call.1']
    #allocation5 [shape = 'u8[32768]{0}', space=vmem, size = 0x8000, scoped, tag = 'input window, operand 1, single buffered']
    #allocation6 [shape = 's32[1]{0}', space=sflag, size = 0x4, scoped, tag = 'scoped memory for tpu_custom_call.1']
    #allocation7 [shape = 'u8[65536]{0}', space=vmem, size = 0x10000, scoped, tag = 'input window, operand 2, single buffered']
    #allocation8 [shape = 'u8[65536]{0}', space=vmem, size = 0x10000, scoped, tag = 'output window, operand 0, single buffered']
    %8 = vsyncpa [#allocation3], 0
    %9 = vsyncpa [#allocation6], 0
    %10 = vsyncpa [#allocation4], 0
    // Predicated region
    $region2: #{tpu_custom_call.1} parent=1 // pred_check
      _
    $region3: #{tpu_custom_call.1} parent=1 // pred_check_branch
      %12 = sbr.rel (0) target = $region5
    $region4: #{tpu_custom_call.1} parent=1 // pred_region
      %s14 = ssub.s32 1024, 1024
      %15 = vsyncadd [#allocation3], %s14
      %s16 = sshll.u32 [#allocation2], 4
      %s17 = int_to_ptr.vmem [resolvable:$true] %s16
      %22 = dma.hbm_to_vmem [thread:$0]  %s0, 1024, %s17, [#allocation3], 64, 64, 4
    $region5: #{tpu_custom_call.1} parent=1 // pred_fallthru
      _
    // Predicated region
    $region6: #{tpu_custom_call.1} parent=1 // pred_check
      _
    $region7: #{tpu_custom_call.1} parent=1 // pred_check_branch
      %24 = sbr.rel (0) target = $region9
    $region8: #{tpu_custom_call.1} parent=1 // pred_region
      %s26 = ssub.s32 1024, 1024
      %27 = vsyncadd [#allocation6], %s26
      %s28 = sshll.u32 [#allocation5], 4
      %s29 = int_to_ptr.vmem [resolvable:$true] %s28
      %34 = dma.hbm_to_vmem [thread:$0]  %s1, 1024, %s29, [#allocation6], 64, 64, 4
    $region9: #{tpu_custom_call.1} parent=1 // pred_fallthru
      _
    // Predicated region
    $region10: #{tpu_custom_call.1} parent=1 // pred_check
      _
    $region11: #{tpu_custom_call.1} parent=1 // pred_check_branch
      %36 = sbr.rel (0) target = $region13
    $region12: #{tpu_custom_call.1} parent=1 // pred_region
      %s38 = ssub.s32 2048, 2048
      %39 = vsyncadd [#allocation6], %s38
      %s40 = sshll.u32 [#allocation7], 4
      %s41 = int_to_ptr.vmem [resolvable:$true] %s40
      %46 = dma.hbm_to_vmem [thread:$0]  %s2, 2048, %s41, [#allocation6], 128, 128, 8
    $region13: #{tpu_custom_call.1} parent=1 // pred_fallthru
      _
    // Predicated region
    $region14: #{tpu_custom_call.1} parent=1 // pred_check
      _
    $region15: #{tpu_custom_call.1} parent=1 // pred_check_branch
      %48 = sbr.rel (0) target = $region17
    $region16: #{tpu_custom_call.1} parent=1 // pred_region
      %49 = dma.done [#allocation3], 1024
    $region17: #{tpu_custom_call.1} parent=1 // pred_fallthru
      _
    // Predicated region
    $region18: #{tpu_custom_call.1} parent=1 // pred_check
      _
    $region19: #{tpu_custom_call.1} parent=1 // pred_check_branch
      %51 = sbr.rel (0) target = $region21
    $region20: #{tpu_custom_call.1} parent=1 // pred_region
      %52 = dma.done [#allocation6], 1024
    $region21: #{tpu_custom_call.1} parent=1 // pred_fallthru
      _
    // Predicated region
    $region22: #{tpu_custom_call.1} parent=1 // pred_check
      _
    $region23: #{tpu_custom_call.1} parent=1 // pred_check_branch
      %54 = sbr.rel (0) target = $region25
    $region24: #{tpu_custom_call.1} parent=1 // pred_region
      %55 = dma.done [#allocation6], 2048
    $region25: #{tpu_custom_call.1} parent=1 // pred_fallthru
      _
    %p57 = scmp.eq.s32.totalorder 0, 0
    // Predicated region
    $region26: #{tpu_custom_call.1} parent=1 // pred_check
      %p58 = pneg %p57
    $region27: #{tpu_custom_call.1} parent=1 // pred_check_branch
      %60 = sbr.rel (%p58) target = $region29
    $region28: #{tpu_custom_call.1} parent=1 // pred_region
      %61 = vst [vmem:[#allocation8] sm:$0xff] 0.0
      %62 = vst [vmem:[#allocation8 + $0x8] sm:$0xff] 0.0
      %63 = vst [vmem:[#allocation8 + $0x10] sm:$0xff] 0.0
      %64 = vst [vmem:[#allocation8 + $0x18] sm:$0xff] 0.0
      %65 = vst [vmem:[#allocation8 + $0x20] sm:$0xff] 0.0
      %66 = vst [vmem:[#allocation8 + $0x28] sm:$0xff] 0.0
      %67 = vst [vmem:[#allocation8 + $0x30] sm:$0xff] 0.0
      %68 = vst [vmem:[#allocation8 + $0x38] sm:$0xff] 0.0
      %69 = vst [vmem:[#allocation8 + $0x40] sm:$0xff] 0.0
      %70 = vst [vmem:[#allocation8 + $0x48] sm:$0xff] 0.0
      %71 = vst [vmem:[#allocation8 + $0x50] sm:$0xff] 0.0
      %72 = vst [vmem:[#allocation8 + $0x58] sm:$0xff] 0.0
      %73 = vst [vmem:[#allocation8 + $0x60] sm:$0xff] 0.0
      %74 = vst [vmem:[#allocation8 + $0x68] sm:$0xff] 0.0
      %75 = vst [vmem:[#allocation8 + $0x70] sm:$0xff] 0.0
      %76 = vst [vmem:[#allocation8 + $0x78] sm:$0xff] 0.0
    $region29: #{tpu_custom_call.1} parent=1 // pred_fallthru
      _
    %s77 = smul.u32 0, 128
    %s78 = sshra.s32 %s77, 3
    %s79 = sand.u32 %s77, 7
    %s80 = smul.addr %s78, 4
    %s81 = scalar_lea.vmem [#allocation2], %s80
    %v82 = vld [vmem:[%s81] sm:$0xf]
    %v83 = vld [vmem:[%s81 + $0x4] sm:$0xf]
    %v84 = vld [vmem:[%s81 + $0x8] sm:$0xf]
    %v85 = vld [vmem:[%s81 + $0xc] sm:$0xf]
    %v86 = vld [vmem:[%s81 + $0x10] sm:$0xf]
    %v87 = vld [vmem:[%s81 + $0x14] sm:$0xf]
    %v88 = vld [vmem:[%s81 + $0x18] sm:$0xf]
    %v89 = vld [vmem:[%s81 + $0x1c] sm:$0xf]
    %v90 = vld [vmem:[%s81 + $0x20] sm:$0xf]
    %v91 = vld [vmem:[%s81 + $0x24] sm:$0xf]
    %v92 = vld [vmem:[%s81 + $0x28] sm:$0xf]
    %v93 = vld [vmem:[%s81 + $0x2c] sm:$0xf]
    %v94 = vld [vmem:[%s81 + $0x30] sm:$0xf]
    %v95 = vld [vmem:[%s81 + $0x34] sm:$0xf]
    %v96 = vld [vmem:[%s81 + $0x38] sm:$0xf]
    %v97 = vld [vmem:[%s81 + $0x3c] sm:$0xf]
    %v98 = vld [vmem:[#allocation8] sm:$0xff]
    %v99 = vld [vmem:[#allocation8 + $0x8] sm:$0xff]
    %v100 = vld [vmem:[#allocation8 + $0x10] sm:$0xff]
    %v101 = vld [vmem:[#allocation8 + $0x18] sm:$0xff]
    %v102 = vld [vmem:[#allocation8 + $0x20] sm:$0xff]
    %v103 = vld [vmem:[#allocation8 + $0x28] sm:$0xff]
    %v104 = vld [vmem:[#allocation8 + $0x30] sm:$0xff]
    %v105 = vld [vmem:[#allocation8 + $0x38] sm:$0xff]
    %v106 = vld [vmem:[#allocation8 + $0x40] sm:$0xff]
    %v107 = vld [vmem:[#allocation8 + $0x48] sm:$0xff]
    %v108 = vld [vmem:[#allocation8 + $0x50] sm:$0xff]
    %v109 = vld [vmem:[#allocation8 + $0x58] sm:$0xff]
    %v110 = vld [vmem:[#allocation8 + $0x60] sm:$0xff]
    %v111 = vld [vmem:[#allocation8 + $0x68] sm:$0xff]
    %v112 = vld [vmem:[#allocation8 + $0x70] sm:$0xff]
    %v113 = vld [vmem:[#allocation8 + $0x78] sm:$0xff]
    %v114 = vld [vmem:[#allocation5] sm:$0xf]
    %v115 = vld [vmem:[#allocation5 + $0x4] sm:$0xf]
    %v116 = vld [vmem:[#allocation5 + $0x8] sm:$0xf]
    %v117 = vld [vmem:[#allocation5 + $0xc] sm:$0xf]
    %v118 = vld [vmem:[#allocation5 + $0x10] sm:$0xf]
    %v119 = vld [vmem:[#allocation5 + $0x14] sm:$0xf]
    %v120 = vld [vmem:[#allocation5 + $0x18] sm:$0xf]
    %v121 = vld [vmem:[#allocation5 + $0x1c] sm:$0xf]
    %v122 = vld [vmem:[#allocation5 + $0x20] sm:$0xf]
    %v123 = vld [vmem:[#allocation5 + $0x24] sm:$0xf]
    %v124 = vld [vmem:[#allocation5 + $0x28] sm:$0xf]
    %v125 = vld [vmem:[#allocation5 + $0x2c] sm:$0xf]
    %v126 = vld [vmem:[#allocation5 + $0x30] sm:$0xf]
    %v127 = vld [vmem:[#allocation5 + $0x34] sm:$0xf]
    %v128 = vld [vmem:[#allocation5 + $0x38] sm:$0xf]
    %v129 = vld [vmem:[#allocation5 + $0x3c] sm:$0xf]
    %v146 = vunpack.c.l.b16 %v114
    %v147 = vunpack.c.l.b16 %v115
    %v148 = vunpack.c.l.b16 %v116
    %v149 = vunpack.c.l.b16 %v117
    %v150 = vunpack.c.l.b16 %v118
    %v151 = vunpack.c.l.b16 %v119
    %v152 = vunpack.c.l.b16 %v120
    %v153 = vunpack.c.l.b16 %v121
    %v154 = vunpack.c.l.b16 %v122
    %v155 = vunpack.c.l.b16 %v123
    %v156 = vunpack.c.l.b16 %v124
    %v157 = vunpack.c.l.b16 %v125
    %v158 = vunpack.c.l.b16 %v126
    %v159 = vunpack.c.l.b16 %v127
    %v160 = vunpack.c.l.b16 %v128
    %v161 = vunpack.c.l.b16 %v129
    %v162 = vpack.c.b16 %v147, %v146
    %v163 = vpack.c.b16 %v149, %v148
    %v164 = vpack.c.b16 %v151, %v150
    %v165 = vpack.c.b16 %v153, %v152
    %v166 = vpack.c.b16 %v155, %v154
    %v167 = vpack.c.b16 %v157, %v156
    %v168 = vpack.c.b16 %v159, %v158
    %v169 = vpack.c.b16 %v161, %v160
    %v194 = vunpack.c.l.b16 %v82
    %v195 = vunpack.c.l.b16 %v83
    %v196 = vunpack.c.l.b16 %v84
    %v197 = vunpack.c.l.b16 %v85
    %v198 = vunpack.c.l.b16 %v86
    %v199 = vunpack.c.l.b16 %v87
    %v200 = vunpack.c.l.b16 %v88
    %v201 = vunpack.c.l.b16 %v89
    %v202 = vunpack.c.l.b16 %v90
    %v203 = vunpack.c.l.b16 %v91
    %v204 = vunpack.c.l.b16 %v92
    %v205 = vunpack.c.l.b16 %v93
    %v206 = vunpack.c.l.b16 %v94
    %v207 = vunpack.c.l.b16 %v95
    %v208 = vunpack.c.l.b16 %v96
    %v209 = vunpack.c.l.b16 %v97
    %v210 = vpack.c.b16 %v195, %v194
    %v211 = vpack.c.b16 %v197, %v196
    %v212 = vpack.c.b16 %v199, %v198
    %v213 = vpack.c.b16 %v201, %v200
    %v214 = vpack.c.b16 %v203, %v202
    %v215 = vpack.c.b16 %v205, %v204
    %v216 = vpack.c.b16 %v207, %v206
    %v217 = vpack.c.b16 %v209, %v208
    %226 = vmatprep.subr.bf16.mxu0 0
    %227 = vmatpush1.bf16.msra.mxu0 %v210
    %228 = vmatprep.subr.bf16.mxu0 0
    %229 = vmatpush1.bf16.msra.mxu0 %v211
    %230 = vmatprep.subr.bf16.mxu0 0
    %231 = vmatpush1.bf16.msra.mxu0 %v212
    %232 = vmatprep.subr.bf16.mxu0 0
    %233 = vmatpush1.bf16.msra.mxu0 %v213
    %234 = vmatprep.subr.bf16.mxu0 0
    %235 = vmatpush1.bf16.msra.mxu0 %v214
    %236 = vmatprep.subr.bf16.mxu0 0
    %237 = vmatpush1.bf16.msra.mxu0 %v215
    %238 = vmatprep.subr.bf16.mxu0 0
    %239 = vmatpush1.bf16.msra.mxu0 %v216
    %240 = vmatprep.subr.bf16.mxu0 0
    %241 = vmatpush1.bf16.msra.mxu0 %v217
    %242 = vmatprep.subr.bf16.mxu0 0
    %243 = vmatpush1.bf16.msra.mxu0 0
    %244 = vmatprep.subr.bf16.mxu0 0
    %245 = vmatpush1.bf16.msra.mxu0 0
    %246 = vmatprep.subr.bf16.mxu0 0
    %247 = vmatpush1.bf16.msra.mxu0 0
    %248 = vmatprep.subr.bf16.mxu0 0
    %249 = vmatpush1.bf16.msra.mxu0 0
    %250 = vmatprep.subr.bf16.mxu0 0
    %251 = vmatpush1.bf16.msra.mxu0 0
    %252 = vmatprep.subr.bf16.mxu0 0
    %253 = vmatpush1.bf16.msra.mxu0 0
    %254 = vmatprep.subr.bf16.mxu0 0
    %255 = vmatpush1.bf16.msra.mxu0 0
    %256 = vmatprep.subr.bf16.mxu0 0
    %257 = vmatpush1.bf16.msra.mxu0 0
    %258 = vmatprep.mubr.bf16.mxu0 0
    %259 = vmatmul.mubr.bf16.gmra.mrb[0].mxu0 %v162
    %v260 = vpop.f32.mrb[0].mxu0
    %v261 = vadd.f32 0.0, %v260
    %v262 = vpop.f32.mrb[0].mxu0
    %v263 = vpop.f32.mrb[0].mxu0
    %v264 = vadd.f32 0.0, %v263
    %v265 = vpop.f32.mrb[0].mxu0
    %266 = vmatprep.mubr.bf16.mxu0 0
    %267 = vmatmul.mubr.bf16.gmra.mrb[0].mxu0 %v163
    %v268 = vpop.f32.mrb[0].mxu0
    %v269 = vadd.f32 0.0, %v268
    %v270 = vpop.f32.mrb[0].mxu0
    %v271 = vpop.f32.mrb[0].mxu0
    %v272 = vadd.f32 0.0, %v271
    %v273 = vpop.f32.mrb[0].mxu0
    %274 = vmatprep.mubr.bf16.mxu0 0
    %275 = vmatmul.mubr.bf16.gmra.mrb[0].mxu0 %v164
    %v276 = vpop.f32.mrb[0].mxu0
    %v277 = vadd.f32 0.0, %v276
    %v278 = vpop.f32.mrb[0].mxu0
    %v279 = vpop.f32.mrb[0].mxu0
    %v280 = vadd.f32 0.0, %v279
    %v281 = vpop.f32.mrb[0].mxu0
    %282 = vmatprep.mubr.bf16.mxu0 0
    %283 = vmatmul.mubr.bf16.gmra.mrb[0].mxu0 %v165
    %v284 = vpop.f32.mrb[0].mxu0
    %v285 = vadd.f32 0.0, %v284
    %v286 = vpop.f32.mrb[0].mxu0
    %v287 = vpop.f32.mrb[0].mxu0
    %v288 = vadd.f32 0.0, %v287
    %v289 = vpop.f32.mrb[0].mxu0
    %290 = vmatprep.mubr.bf16.mxu0 0
    %291 = vmatmul.mubr.bf16.gmra.mrb[0].mxu0 %v166
    %v292 = vpop.f32.mrb[0].mxu0
    %v293 = vadd.f32 0.0, %v292
    %v294 = vpop.f32.mrb[0].mxu0
    %v295 = vpop.f32.mrb[0].mxu0
    %v296 = vadd.f32 0.0, %v295
    %v297 = vpop.f32.mrb[0].mxu0
    %298 = vmatprep.mubr.bf16.mxu0 0
    %299 = vmatmul.mubr.bf16.gmra.mrb[0].mxu0 %v167
    %v300 = vpop.f32.mrb[0].mxu0
    %v301 = vadd.f32 0.0, %v300
    %v302 = vpop.f32.mrb[0].mxu0
    %v303 = vpop.f32.mrb[0].mxu0
    %v304 = vadd.f32 0.0, %v303
    %v305 = vpop.f32.mrb[0].mxu0
    %306 = vmatprep.mubr.bf16.mxu0 0
    %307 = vmatmul.mubr.bf16.gmra.mrb[0].mxu0 %v168
    %v308 = vpop.f32.mrb[0].mxu0
    %v309 = vadd.f32 0.0, %v308
    %v310 = vpop.f32.mrb[0].mxu0
    %v311 = vpop.f32.mrb[0].mxu0
    %v312 = vadd.f32 0.0, %v311
    %v313 = vpop.f32.mrb[0].mxu0
    %314 = vmatprep.mubr.bf16.mxu0 0
    %315 = vmatmul.mubr.bf16.gmra.mrb[0].mxu0 %v169
    %v316 = vpop.f32.mrb[0].mxu0
    %v317 = vadd.f32 0.0, %v316
    %v318 = vpop.f32.mrb[0].mxu0
    %v319 = vpop.f32.mrb[0].mxu0
    %v320 = vadd.f32 0.0, %v319
    %v321 = vpop.f32.mrb[0].mxu0
    %322 = vdwg.mxu0
    %v323 = vadd.f32 %v98, %v261
    %v324 = vadd.f32 %v99, %v264
    %v325 = vadd.f32 %v100, %v269
    %v326 = vadd.f32 %v101, %v272
    %v327 = vadd.f32 %v102, %v277
    %v328 = vadd.f32 %v103, %v280
    %v329 = vadd.f32 %v104, %v285
    %v330 = vadd.f32 %v105, %v288
    %v331 = vadd.f32 %v106, %v293
    %v332 = vadd.f32 %v107, %v296
    %v333 = vadd.f32 %v108, %v301
    %v334 = vadd.f32 %v109, %v304
    %v335 = vadd.f32 %v110, %v309
    %v336 = vadd.f32 %v111, %v312
    %v337 = vadd.f32 %v112, %v317
    %v338 = vadd.f32 %v113, %v320
    %339 = vst [vmem:[#allocation8] sm:$0xff] %v323
    %340 = vst [vmem:[#allocation8 + $0x8] sm:$0xff] %v324
    %341 = vst [vmem:[#allocation8 + $0x10] sm:$0xff] %v325
    %342 = vst [vmem:[#allocation8 + $0x18] sm:$0xff] %v326
    %343 = vst [vmem:[#allocation8 + $0x20] sm:$0xff] %v327
    %344 = vst [vmem:[#allocation8 + $0x28] sm:$0xff] %v328
    %345 = vst [vmem:[#allocation8 + $0x30] sm:$0xff] %v329
    %346 = vst [vmem:[#allocation8 + $0x38] sm:$0xff] %v330
    %347 = vst [vmem:[#allocation8 + $0x40] sm:$0xff] %v331
    %348 = vst [vmem:[#allocation8 + $0x48] sm:$0xff] %v332
    %349 = vst [vmem:[#allocation8 + $0x50] sm:$0xff] %v333
    %350 = vst [vmem:[#allocation8 + $0x58] sm:$0xff] %v334
    %351 = vst [vmem:[#allocation8 + $0x60] sm:$0xff] %v335
    %352 = vst [vmem:[#allocation8 + $0x68] sm:$0xff] %v336
    %353 = vst [vmem:[#allocation8 + $0x70] sm:$0xff] %v337
    %354 = vst [vmem:[#allocation8 + $0x78] sm:$0xff] %v338
    // Predicated region
    $region30: #{tpu_custom_call.1} parent=1 // pred_check
      %p355 = pneg %p57
    $region31: #{tpu_custom_call.1} parent=1 // pred_check_branch
      %357 = sbr.rel (%p355) target = $region33
    $region32: #{tpu_custom_call.1} parent=1 // pred_region
      %v358 = vld [vmem:[#allocation8] sm:$0xff]
      %v359 = vld [vmem:[#allocation8 + $0x8] sm:$0xff]
      %v360 = vld [vmem:[#allocation8 + $0x10] sm:$0xff]
      %v361 = vld [vmem:[#allocation8 + $0x18] sm:$0xff]
      %v362 = vld [vmem:[#allocation8 + $0x20] sm:$0xff]
      %v363 = vld [vmem:[#allocation8 + $0x28] sm:$0xff]
      %v364 = vld [vmem:[#allocation8 + $0x30] sm:$0xff]
      %v365 = vld [vmem:[#allocation8 + $0x38] sm:$0xff]
      %v366 = vld [vmem:[#allocation8 + $0x40] sm:$0xff]
      %v367 = vld [vmem:[#allocation8 + $0x48] sm:$0xff]
      %v368 = vld [vmem:[#allocation8 + $0x50] sm:$0xff]
      %v369 = vld [vmem:[#allocation8 + $0x58] sm:$0xff]
      %v370 = vld [vmem:[#allocation8 + $0x60] sm:$0xff]
      %v371 = vld [vmem:[#allocation8 + $0x68] sm:$0xff]
      %v372 = vld [vmem:[#allocation8 + $0x70] sm:$0xff]
      %v373 = vld [vmem:[#allocation8 + $0x78] sm:$0xff]
      %v374 = vmul.f32 %v358, 0.9
      %v375 = vmul.f32 %v359, 0.9
      %v376 = vmul.f32 %v360, 0.9
      %v377 = vmul.f32 %v361, 0.9
      %v378 = vmul.f32 %v362, 0.9
      %v379 = vmul.f32 %v363, 0.9
      %v380 = vmul.f32 %v364, 0.9
      %v381 = vmul.f32 %v365, 0.9
      %v382 = vmul.f32 %v366, 0.9
      %v383 = vmul.f32 %v367, 0.9
      %v384 = vmul.f32 %v368, 0.9
      %v385 = vmul.f32 %v369, 0.9
      %v386 = vmul.f32 %v370, 0.9
      %v387 = vmul.f32 %v371, 0.9
      %v388 = vmul.f32 %v372, 0.9
      %v389 = vmul.f32 %v373, 0.9
      %v390 = vld [vmem:[#allocation7] sm:$0xff]
      %v391 = vld [vmem:[#allocation7 + $0x8] sm:$0xff]
      %v392 = vld [vmem:[#allocation7 + $0x10] sm:$0xff]
      %v393 = vld [vmem:[#allocation7 + $0x18] sm:$0xff]
      %v394 = vld [vmem:[#allocation7 + $0x20] sm:$0xff]
      %v395 = vld [vmem:[#allocation7 + $0x28] sm:$0xff]
      %v396 = vld [vmem:[#allocation7 + $0x30] sm:$0xff]
      %v397 = vld [vmem:[#allocation7 + $0x38] sm:$0xff]
      %v398 = vld [vmem:[#allocation7 + $0x40] sm:$0xff]
      %v399 = vld [vmem:[#allocation7 + $0x48] sm:$0xff]
      %v400 = vld [vmem:[#allocation7 + $0x50] sm:$0xff]
      %v401 = vld [vmem:[#allocation7 + $0x58] sm:$0xff]
      %v402 = vld [vmem:[#allocation7 + $0x60] sm:$0xff]
      %v403 = vld [vmem:[#allocation7 + $0x68] sm:$0xff]
      %v404 = vld [vmem:[#allocation7 + $0x70] sm:$0xff]
      %v405 = vld [vmem:[#allocation7 + $0x78] sm:$0xff]
      %v406 = vadd.f32 %v374, %v390
      %v407 = vadd.f32 %v375, %v391
      %v408 = vadd.f32 %v376, %v392
      %v409 = vadd.f32 %v377, %v393
      %v410 = vadd.f32 %v378, %v394
      %v411 = vadd.f32 %v379, %v395
      %v412 = vadd.f32 %v380, %v396
      %v413 = vadd.f32 %v381, %v397
      %v414 = vadd.f32 %v382, %v398
      %v415 = vadd.f32 %v383, %v399
      %v416 = vadd.f32 %v384, %v400
      %v417 = vadd.f32 %v385, %v401
      %v418 = vadd.f32 %v386, %v402
      %v419 = vadd.f32 %v387, %v403
      %v420 = vadd.f32 %v388, %v404
      %v421 = vadd.f32 %v389, %v405
      %422 = vst [vmem:[#allocation8] sm:$0xff] %v406
      %423 = vst [vmem:[#allocation8 + $0x8] sm:$0xff] %v407
      %424 = vst [vmem:[#allocation8 + $0x10] sm:$0xff] %v408
      %425 = vst [vmem:[#allocation8 + $0x18] sm:$0xff] %v409
      %426 = vst [vmem:[#allocation8 + $0x20] sm:$0xff] %v410
      %427 = vst [vmem:[#allocation8 + $0x28] sm:$0xff] %v411
      %428 = vst [vmem:[#allocation8 + $0x30] sm:$0xff] %v412
      %429 = vst [vmem:[#allocation8 + $0x38] sm:$0xff] %v413
      %430 = vst [vmem:[#allocation8 + $0x40] sm:$0xff] %v414
      %431 = vst [vmem:[#allocation8 + $0x48] sm:$0xff] %v415
      %432 = vst [vmem:[#allocation8 + $0x50] sm:$0xff] %v416
      %433 = vst [vmem:[#allocation8 + $0x58] sm:$0xff] %v417
      %434 = vst [vmem:[#allocation8 + $0x60] sm:$0xff] %v418
      %435 = vst [vmem:[#allocation8 + $0x68] sm:$0xff] %v419
      %436 = vst [vmem:[#allocation8 + $0x70] sm:$0xff] %v420
      %437 = vst [vmem:[#allocation8 + $0x78] sm:$0xff] %v421
    $region33: #{tpu_custom_call.1} parent=1 // pred_fallthru
      _
    // Predicated region
    $region34: #{tpu_custom_call.1} parent=1 // pred_check
      _
    $region35: #{tpu_custom_call.1} parent=1 // pred_check_branch
      %439 = sbr.rel (0) target = $region37
    $region36: #{tpu_custom_call.1} parent=1 // pred_region
      %s441 = ssub.s32 2048, 2048
      %442 = vsyncadd [#allocation4], %s441
      %s443 = sshll.u32 [#allocation8], 4
      %s444 = int_to_ptr.vmem [resolvable:$true] %s443
      %449 = dma.vmem_to_hbm [thread:$0]  %s444, 2048, %s3, [#allocation4], 128, 128, 8
    $region37: #{tpu_custom_call.1} parent=1 // pred_fallthru
      _
    // Predicated region
    $region38: #{tpu_custom_call.1} parent=1 // pred_check
      _
    $region39: #{tpu_custom_call.1} parent=1 // pred_check_branch
      %451 = sbr.rel (0) target = $region41
    $region40: #{tpu_custom_call.1} parent=1 // pred_region
      %452 = dma.done [#allocation4], 2048
    $region41: #{tpu_custom_call.1} parent=1 // pred_fallthru
      _
    %453 = vsyncpa [#allocation3], 1
    %454 = vsyncpa [#allocation6], 1
    %455 = vsyncpa [#allocation4], 1

</llo_original>
